<compile_context>
chip_gen: v7x
topology: tpu7x:2x2x1
jax: 0.10.0
libtpu: 0.0.40
codegen_flags: <defaults>
</compile_context>

<pallas_src>
import functools
import math

import jax
import jax.numpy as jnp
from jax import lax
from jax.experimental import pallas as pl
from jax.experimental.pallas import tpu as pltpu

_LANE = 128


def _flash_qkv_kernel(q_ref, k_ref, v_ref, o_ref, m_ref, l_ref, acc_ref, *,
                      scale_sq, compute_dtype):
    """One (batch, head-group, kv-tile) grid step.

    q_ref:   (h_blk, ch, L)        resident across the kv axis
    k_ref:   (h_blk, ch, kv_tile)
    v_ref:   (h_blk, ch, kv_tile)
    o_ref:   (h_blk, ch, L)        written on the last kv step only
    m_ref:   (h_blk, 1,  L) f32    running max       (scratch)
    l_ref:   (h_blk, 1,  L) f32    running exp-sum   (scratch)
    acc_ref: (h_blk, ch, L) f32    unnormalized PV accumulator (scratch)
    """
    kv = pl.program_id(2)

    @pl.when(kv == 0)
    def _init():
        m_ref[...] = jnp.full_like(m_ref, -jnp.inf)
        l_ref[...] = jnp.zeros_like(l_ref)
        acc_ref[...] = jnp.zeros_like(acc_ref)

    q = q_ref[...]
    k = k_ref[...]
    v = v_ref[...]
    if compute_dtype is not None:          # optional low-precision MXU path (v5e)
        q = q.astype(compute_dtype)
        k = k.astype(compute_dtype)
        v = v.astype(compute_dtype)
    # Fold the full 1/sqrt(ch) into K: (ch, kv_tile) elems/step is the cheapest
    # place (vs. q: ch*L, vs. scores: kv_tile*L).  Mathematically identical to
    # torch's ch**-0.25 on both q and k (bitwise-different, fine in f32/bf16).
    k = k * scale_sq

    # Scores already transposed: w[h, s, t] = sum_c k[h,c,s] * q[h,c,t], so the
    # softmax reduction runs over sublanes and the PV matmul below needs no
    # (L, L) relayout of the big tile.
    w = lax.dot_general(
        k, q,
        dimension_numbers=(((1,), (1,)), ((0,), (0,))),
        preferred_element_type=jnp.float32,
    )                                                     # (h_blk, kv_tile, L) f32

    m_prev = m_ref[...]
    m_new = jnp.maximum(m_prev, jnp.max(w, axis=1, keepdims=True))   # (h, 1, L)
    alpha = jnp.exp(m_prev - m_new)                                  # (h, 1, L)
    p = jnp.exp(w - m_new)                                           # (h, tk, L)

    l_ref[...] = alpha * l_ref[...] + jnp.sum(p, axis=1, keepdims=True)
    m_ref[...] = m_new

    # pv[h, c, t] = sum_s v[h, c, s] * p[h, s, t]  (deferred normalization:
    # p is the *unnormalized* exp, cast to the matmul dtype).
    pv = lax.dot_general(
        v, p.astype(v.dtype),
        dimension_numbers=(((2,), (1,)), ((0,), (0,))),
        preferred_element_type=jnp.float32,
    )                                                     # (h_blk, ch, L) f32
    acc_ref[...] = alpha * acc_ref[...] + pv

    @pl.when(kv == pl.num_programs(2) - 1)
    def _finalize():
        l = l_ref[...]
        inv_l = pl.reciprocal(l, approx=True)             # EUP slot
        inv_l = inv_l * (2.0 - l * inv_l)                 # one Newton step -> ~f32 exact
        o_ref[...] = (acc_ref[...] * inv_l).astype(o_ref.dtype)


def _footprint_bytes(h, ch, length, kv_tile, itemsize):
    """Rough per-step VMEM footprint (2-deep pipelined I/O + f32 scratch/temps)."""
    io = 2 * h * ch * (length + 2 * kv_tile) * itemsize      # q, k, v blocks
    io += 2 * h * ch * length * itemsize                     # output block
    scratch = h * ch * length * 4 + 2 * h * 8 * length * 4   # acc + m/l (sublane pad)
    score = 3 * h * kv_tile * length * 4                     # w, p + broadcast temps
    return io + scratch + score


def _pick_tiles(bs, n_heads, ch, length, itemsize, budget_bytes,
                h_blk=None, kv_tile=None):
    if kv_tile is None:
        if length % _LANE != 0 or length <= 512:
            kv_tile = length                                 # single KV tile
        else:
            kv_tile = next(t for t in (512, 256, 128) if length % t == 0)
            # Shrink further if a single head at this tile still overflows.
            while (kv_tile > _LANE and kv_tile % (2 * _LANE) == 0
                   and _footprint_bytes(1, ch, length, kv_tile, itemsize) > budget_bytes):
                kv_tile //= 2
        # TODO(synk): add a query-length grid axis for extreme lengths where even
        # (h_blk=1, kv_tile=128) overflows the VMEM budget.
    if h_blk is None:
        h_blk = 1
        for h in range(2, n_heads + 1):
            if n_heads % h:
                continue
            if _footprint_bytes(h, ch, length, kv_tile, itemsize) > budget_bytes:
                continue
            # DMA roofline saturates around a few-MiB tiles; bigger tiles only add
            # VMEM/vreg pressure (matters most on v7x's 64 MiB VMEM).
            if h * ch * (length + 2 * kv_tile) * itemsize > 4 * 1024 * 1024:
                continue
            # Keep >= 4 parallel grid steps (2 per TensorCore on v7x) when the
            # problem is large enough to allow it.
            if bs * (n_heads // h) < 4 <= bs * n_heads:
                continue
            h_blk = h
    return h_blk, kv_tile


def _qkv_attention_xla(qkv, n_heads):
    """Plain-XLA path, also the correctness reference (mirrors torch exactly)."""
    bs, width, length = qkv.shape
    ch = width // (3 * n_heads)
    q, k, v = jnp.split(qkv, 3, axis=1)
    scale = 1.0 / math.sqrt(math.sqrt(ch))
    q = (q * scale).reshape(bs * n_heads, ch, length)
    k = (k * scale).reshape(bs * n_heads, ch, length)
    v = v.reshape(bs * n_heads, ch, length)
    w = jnp.einsum('bct,bcs->bts', q, k)
    w = jax.nn.softmax(w.astype(jnp.float32), axis=-1).astype(w.dtype)
    a = jnp.einsum('bts,bcs->bct', w, v)
    return a.reshape(bs, -1, length)


_reference = _qkv_attention_xla


def qkv_attention(qkv, n_heads, *, h_blk=None, kv_tile=None,
                  vmem_limit_bytes=None, compute_dtype=None,
                  min_pallas_length=_LANE):
    """Pallas implementation of QKVAttention.forward.

    qkv: (bs, 3 * n_heads * ch, length) -> (bs, n_heads * ch, length)
    compute_dtype: optionally cast q/k/v to e.g. bfloat16 inside the kernel
      (f32 accumulation kept) — large MXU win on v5e for f32 models.
    """
    bs, width, length = qkv.shape
    assert width % (3 * n_heads) == 0, (width, n_heads)
    ch = width // (3 * n_heads)
    scale_sq = 1.0 / math.sqrt(ch)       # (1/ch**0.25)**2 folded into k only

    # Sub-128 lengths: vregs would be mostly empty and output stores
    # lane-masked; the Pallas call is pure overhead there.
    if length < min_pallas_length:
        return _qkv_attention_xla(qkv, n_heads)

    itemsize = jnp.dtype(qkv.dtype).itemsize
    qkv5 = qkv.reshape(bs, 3, n_heads, ch, length)   # free, contiguous reshape

    if vmem_limit_bytes is None:
        try:
            cap = pltpu.get_tpu_info().vmem_capacity_bytes
        except Exception:
            cap = 64 * 1024 * 1024                   # conservative (v7x-safe)
        vmem_limit_bytes = min((3 * cap) // 4, 100 * 1024 * 1024)
    vmem_limit_bytes = int(vmem_limit_bytes)
    # Plan tiles against ~60% of the scoped limit: headroom for Mosaic internal
    # scratch, the f32 PV tile and the output cast (matters on v7x).
    pick_budget = (6 * vmem_limit_bytes) // 10

    h_blk, kv_tile = _pick_tiles(bs, n_heads, ch, length, itemsize, pick_budget,
                                 h_blk=h_blk, kv_tile=kv_tile)
    assert n_heads % h_blk == 0, (n_heads, h_blk)
    assert length % kv_tile == 0, (length, kv_tile)
    num_kv = length // kv_tile

    grid = (bs, n_heads // h_blk, num_kv)

    # Same qkv5 array passed three times; index_maps select q/k/v on the size-3
    # axis -> no wrapper-side split/copy, no extra HBM traffic.  The q block is
    # kv-invariant so Pallas only re-DMAs it when (batch, head-group) changes.
    q_spec = pl.BlockSpec((None, None, h_blk, ch, length),
                          lambda b, h, kv: (b, 0, h, 0, 0))
    k_spec = pl.BlockSpec((None, None, h_blk, ch, kv_tile),
                          lambda b, h, kv: (b, 1, h, 0, kv))
    v_spec = pl.BlockSpec((None, None, h_blk, ch, kv_tile),
                          lambda b, h, kv: (b, 2, h, 0, kv))
    out_spec = pl.BlockSpec((None, h_blk, ch, length),
                            lambda b, h, kv: (b, h, 0, 0))

    B = bs * n_heads
    cost = pl.CostEstimate(
        flops=4 * B * length * length * ch,              # QK^T and PV matmuls
        transcendentals=B * length * length,             # exp in the softmax
        bytes_accessed=(qkv.size + B * ch * length) * itemsize,
    )

    kernel = functools.partial(_flash_qkv_kernel,
                               scale_sq=scale_sq, compute_dtype=compute_dtype)

    out = pl.pallas_call(
        kernel,
        out_shape=jax.ShapeDtypeStruct((bs, n_heads, ch, length), qkv.dtype),
        grid_spec=pltpu.PrefetchScalarGridSpec(
            num_scalar_prefetch=0,
            grid=grid,
            in_specs=[q_spec, k_spec, v_spec],
            out_specs=out_spec,
            scratch_shapes=[
                pltpu.VMEM((h_blk, 1, length), jnp.float32),    # running max
                pltpu.VMEM((h_blk, 1, length), jnp.float32),    # running exp-sum
                pltpu.VMEM((h_blk, ch, length), jnp.float32),   # unnormalized acc
            ],
        ),
        compiler_params=pltpu.CompilerParams(
            dimension_semantics=("parallel", "parallel", "arbitrary"),
            vmem_limit_bytes=vmem_limit_bytes,
        ),
        cost_estimate=cost,
    )(qkv5, qkv5, qkv5)

    return out.reshape(bs, n_heads * ch, length)


if __name__ == "__main__":
    key = jax.random.PRNGKey(0)
    k1, k2, k3 = jax.random.split(key, 3)

    # 1) Tiny length (L < 128) -> XLA dispatch path (lane-masked Pallas avoided).
    bs, n_heads, ch, length = 2, 4, 8, 16
    qkv = jax.random.normal(k1, (bs, 3 * n_heads * ch, length), dtype=jnp.float32)
    out = jax.block_until_ready(qkv_attention(qkv, n_heads))
    ref = _reference(qkv, n_heads)
    assert out.shape == (bs, n_heads * ch, length), out.shape
    assert jnp.allclose(out, ref, atol=1e-3, rtol=1e-3), "mismatch (fallback, L=16)"

    # 2) Lane-dense single-KV-tile Pallas path (L = 128).
    bs, n_heads, ch, length = 2, 4, 16, 128
    qkv = jax.random.normal(k2, (bs, 3 * n_heads * ch, length), dtype=jnp.float32)
    out = jax.block_until_ready(qkv_attention(qkv, n_heads))
    ref = _reference(qkv, n_heads)
    assert out.shape == (bs, n_heads * ch, length), out.shape
    assert jnp.allclose(out, ref, atol=1e-3, rtol=1e-3), "mismatch (pallas, L=128)"

    # 3) Multi-KV-tile flash path (L = 256, kv_tile forced to 128 so the online
    #    softmax accumulation across the "arbitrary" axis is exercised).
    bs, n_heads, ch, length = 2, 4, 16, 256
    qkv = jax.random.normal(k3, (bs, 3 * n_heads * ch, length), dtype=jnp.float32)
    out = jax.block_until_ready(qkv_attention(qkv, n_heads, kv_tile=128))
    ref = _reference(qkv, n_heads)
    assert out.shape == (bs, n_heads * ch, length), out.shape
    assert jnp.allclose(out, ref, atol=1e-3, rtol=1e-3), "mismatch (flash, L=256)"

    print("KERNEL_OK")
</pallas_src>

<mosaic_0001>
module attributes {stable_mosaic.version = 11 : i64} {
  func.func @_flash_qkv_kernel(%arg0: i32, %arg1: i32, %arg2: i32, %arg3: memref<1x1x2x16x128xf32, #tpu.memory_space<vmem>>, %arg4: memref<1x1x2x16x128xf32, #tpu.memory_space<vmem>>, %arg5: memref<1x1x2x16x128xf32, #tpu.memory_space<vmem>>, %arg6: memref<1x2x16x128xf32, #tpu.memory_space<vmem>>, %arg7: memref<2x1x128xf32, #tpu.memory_space<vmem>>, %arg8: memref<2x1x128xf32, #tpu.memory_space<vmem>>, %arg9: memref<2x16x128xf32, #tpu.memory_space<vmem>>) attributes {dimension_semantics = [#tpu.dimension_semantics<parallel>, #tpu.dimension_semantics<parallel>, #tpu.dimension_semantics<arbitrary>], iteration_bounds = array<i64: 2, 2, 1>, scalar_prefetch = 0 : i64, scratch_operands = 3 : i64, tpu.core_type = #tpu.core_type<tc>, window_params = [{transform_indices = @transform_0, window_bounds = array<i64: 1, 1, 2, 16, 128>}, {transform_indices = @transform_1, window_bounds = array<i64: 1, 1, 2, 16, 128>}, {transform_indices = @transform_2, window_bounds = array<i64: 1, 1, 2, 16, 128>}, {transform_indices = @transform_3, window_bounds = array<i64: 1, 2, 16, 128>}]} {
    %c0_i32 = arith.constant 0 : i32
    %0 = arith.cmpi eq, %arg2, %c0_i32 : i32
    %1 = arith.extui %0 : i1 to i32
    %c0_i32_0 = arith.constant 0 : i32
    %2 = arith.cmpi ne, %1, %c0_i32_0 : i32
    scf.if %2 {
      %cst_39 = arith.constant 0xFF800000 : f32
      %37 = vector.broadcast %cst_39 : f32 to vector<2x1x128xf32>
      %c0_40 = arith.constant 0 : index
      %c0_41 = arith.constant 0 : index
      %c0_42 = arith.constant 0 : index
      %38 = vector.load %arg7[%c0_40, %c0_41, %c0_42] : memref<2x1x128xf32, #tpu.memory_space<vmem>>, vector<2x1x128xf32>
      tpu.vector_store %arg7[%c0_40, %c0_41, %c0_42], %37 {strides = array<i32>} : memref<2x1x128xf32, #tpu.memory_space<vmem>>, vector<2x1x128xf32>,
      %cst_43 = arith.constant 0.000000e+00 : f32
      %39 = vector.broadcast %cst_43 : f32 to vector<2x1x128xf32>
      %c0_44 = arith.constant 0 : index
      %c0_45 = arith.constant 0 : index
      %c0_46 = arith.constant 0 : index
      %40 = vector.load %arg8[%c0_44, %c0_45, %c0_46] : memref<2x1x128xf32, #tpu.memory_space<vmem>>, vector<2x1x128xf32>
      tpu.vector_store %arg8[%c0_44, %c0_45, %c0_46], %39 {strides = array<i32>} : memref<2x1x128xf32, #tpu.memory_space<vmem>>, vector<2x1x128xf32>,
      %cst_47 = arith.constant 0.000000e+00 : f32
      %41 = vector.broadcast %cst_47 : f32 to vector<2x16x128xf32>
      %c0_48 = arith.constant 0 : index
      %c0_49 = arith.constant 0 : index
      %c0_50 = arith.constant 0 : index
      %42 = vector.load %arg9[%c0_48, %c0_49, %c0_50] : memref<2x16x128xf32, #tpu.memory_space<vmem>>, vector<2x16x128xf32>
      tpu.vector_store %arg9[%c0_48, %c0_49, %c0_50], %41 {strides = array<i32>} : memref<2x16x128xf32, #tpu.memory_space<vmem>>, vector<2x16x128xf32>,
    } else {
    }
    %c0 = arith.constant 0 : index
    %c0_1 = arith.constant 0 : index
    %c0_2 = arith.constant 0 : index
    %c0_3 = arith.constant 0 : index
    %c0_4 = arith.constant 0 : index
    %3 = vector.load %arg3[%c0, %c0_1, %c0_2, %c0_3, %c0_4] : memref<1x1x2x16x128xf32, #tpu.memory_space<vmem>>, vector<1x1x2x16x128xf32>
    %4 = vector.shape_cast %3 : vector<1x1x2x16x128xf32> to vector<2x16x128xf32>
    %c0_5 = arith.constant 0 : index
    %c0_6 = arith.constant 0 : index
    %c0_7 = arith.constant 0 : index
    %c0_8 = arith.constant 0 : index
    %c0_9 = arith.constant 0 : index
    %5 = vector.load %arg4[%c0_5, %c0_6, %c0_7, %c0_8, %c0_9] : memref<1x1x2x16x128xf32, #tpu.memory_space<vmem>>, vector<1x1x2x16x128xf32>
    %6 = vector.shape_cast %5 : vector<1x1x2x16x128xf32> to vector<2x16x128xf32>
    %c0_10 = arith.constant 0 : index
    %c0_11 = arith.constant 0 : index
    %c0_12 = arith.constant 0 : index
    %c0_13 = arith.constant 0 : index
    %c0_14 = arith.constant 0 : index
    %7 = vector.load %arg5[%c0_10, %c0_11, %c0_12, %c0_13, %c0_14] : memref<1x1x2x16x128xf32, #tpu.memory_space<vmem>>, vector<1x1x2x16x128xf32>
    %8 = vector.shape_cast %7 : vector<1x1x2x16x128xf32> to vector<2x16x128xf32>
    %cst = arith.constant 2.500000e-01 : f32
    %9 = vector.broadcast %cst : f32 to vector<2x16x128xf32>
    %10 = arith.mulf %6, %9 : vector<2x16x128xf32>
    %cst_15 = arith.constant dense<0.000000e+00> : vector<2x128x128xf32>
    %11 = tpu.matmul %10, %4, %cst_15 {dimension_numbers = #tpu.dot_dimension_numbers<[1], [1], [2], [2], [0, 0, 0, 2, 1, 2], [0], [0]>} : vector<2x16x128xf32>, vector<2x16x128xf32>, vector<2x128x128xf32> -> vector<2x128x128xf32>
    %c0_16 = arith.constant 0 : index
    %c0_17 = arith.constant 0 : index
    %c0_18 = arith.constant 0 : index
    %12 = vector.load %arg7[%c0_16, %c0_17, %c0_18] : memref<2x1x128xf32, #tpu.memory_space<vmem>>, vector<2x1x128xf32>
    %cst_19 = arith.constant dense<0xFF800000> : vector<2x128xf32>
    %13 = vector.multi_reduction <maximumf>, %11, %cst_19 [1] : vector<2x128x128xf32> to vector<2x128xf32>
    %14 = vector.shape_cast %13 : vector<2x128xf32> to vector<2x1x128xf32>
    %15 = arith.maximumf %12, %14 : vector<2x1x128xf32>
    %16 = arith.subf %12, %15 : vector<2x1x128xf32>
    %17 = math.exp %16 : vector<2x1x128xf32>
    %18 = vector.broadcast %15 : vector<2x1x128xf32> to vector<2x128x128xf32>
    %19 = arith.subf %11, %18 : vector<2x128x128xf32>
    %20 = math.exp %19 : vector<2x128x128xf32>
    %c0_20 = arith.constant 0 : index
    %c0_21 = arith.constant 0 : index
    %c0_22 = arith.constant 0 : index
    %21 = vector.load %arg8[%c0_20, %c0_21, %c0_22] : memref<2x1x128xf32, #tpu.memory_space<vmem>>, vector<2x1x128xf32>
    %22 = arith.mulf %17, %21 : vector<2x1x128xf32>
    %cst_23 = arith.constant dense<0.000000e+00> : vector<2x128xf32>
    %23 = vector.multi_reduction <add>, %20, %cst_23 [1] : vector<2x128x128xf32> to vector<2x128xf32>
    %24 = vector.shape_cast %23 : vector<2x128xf32> to vector<2x1x128xf32>
    %25 = arith.addf %22, %24 : vector<2x1x128xf32>
    %c0_24 = arith.constant 0 : index
    %c0_25 = arith.constant 0 : index
    %c0_26 = arith.constant 0 : index
    %26 = vector.load %arg8[%c0_24, %c0_25, %c0_26] : memref<2x1x128xf32, #tpu.memory_space<vmem>>, vector<2x1x128xf32>
    tpu.vector_store %arg8[%c0_24, %c0_25, %c0_26], %25 {strides = array<i32>} : memref<2x1x128xf32, #tpu.memory_space<vmem>>, vector<2x1x128xf32>,
    %c0_27 = arith.constant 0 : index
    %c0_28 = arith.constant 0 : index
    %c0_29 = arith.constant 0 : index
    %27 = vector.load %arg7[%c0_27, %c0_28, %c0_29] : memref<2x1x128xf32, #tpu.memory_space<vmem>>, vector<2x1x128xf32>
    tpu.vector_store %arg7[%c0_27, %c0_28, %c0_29], %15 {strides = array<i32>} : memref<2x1x128xf32, #tpu.memory_space<vmem>>, vector<2x1x128xf32>,
    %cst_30 = arith.constant dense<0.000000e+00> : vector<2x16x128xf32>
    %28 = tpu.matmul %8, %20, %cst_30 {dimension_numbers = #tpu.dot_dimension_numbers<[2], [1], [1], [2], [0, 0, 0, 1, 1, 2], [0], [0]>} : vector<2x16x128xf32>, vector<2x128x128xf32>, vector<2x16x128xf32> -> vector<2x16x128xf32>
    %c0_31 = arith.constant 0 : index
    %c0_32 = arith.constant 0 : index
    %c0_33 = arith.constant 0 : index
    %29 = vector.load %arg9[%c0_31, %c0_32, %c0_33] : memref<2x16x128xf32, #tpu.memory_space<vmem>>, vector<2x16x128xf32>
    %30 = vector.broadcast %17 : vector<2x1x128xf32> to vector<2x16x128xf32>
    %31 = arith.mulf %30, %29 : vector<2x16x128xf32>
    %32 = arith.addf %31, %28 : vector<2x16x128xf32>
    %c0_34 = arith.constant 0 : index
    %c0_35 = arith.constant 0 : index
    %c0_36 = arith.constant 0 : index
    %33 = vector.load %arg9[%c0_34, %c0_35, %c0_36] : memref<2x16x128xf32, #tpu.memory_space<vmem>>, vector<2x16x128xf32>
    tpu.vector_store %arg9[%c0_34, %c0_35, %c0_36], %32 {strides = array<i32>} : memref<2x16x128xf32, #tpu.memory_space<vmem>>, vector<2x16x128xf32>,
    %c0_i32_37 = arith.constant 0 : i32
    %34 = arith.cmpi eq, %arg2, %c0_i32_37 : i32
    %35 = arith.extui %34 : i1 to i32
    %c0_i32_38 = arith.constant 0 : i32
    %36 = arith.cmpi ne, %35, %c0_i32_38 : i32
    scf.if %36 {
      %c0_39 = arith.constant 0 : index
      %c0_40 = arith.constant 0 : index
      %c0_41 = arith.constant 0 : index
      %37 = vector.load %arg8[%c0_39, %c0_40, %c0_41] : memref<2x1x128xf32, #tpu.memory_space<vmem>>, vector<2x1x128xf32>
      %38 = tpu.reciprocal %37 {approx = true} : vector<2x1x128xf32> -> vector<2x1x128xf32>
      %39 = arith.mulf %37, %38 : vector<2x1x128xf32>
      %cst_42 = arith.constant 2.000000e+00 : f32
      %40 = vector.broadcast %cst_42 : f32 to vector<2x1x128xf32>
      %41 = arith.subf %40, %39 : vector<2x1x128xf32>
      %42 = arith.mulf %38, %41 : vector<2x1x128xf32>
      %c0_43 = arith.constant 0 : index
      %c0_44 = arith.constant 0 : index
      %c0_45 = arith.constant 0 : index
      %43 = vector.load %arg9[%c0_43, %c0_44, %c0_45] : memref<2x16x128xf32, #tpu.memory_space<vmem>>, vector<2x16x128xf32>
      %44 = vector.broadcast %42 : vector<2x1x128xf32> to vector<2x16x128xf32>
      %45 = arith.mulf %43, %44 : vector<2x16x128xf32>
      %c0_46 = arith.constant 0 : index
      %c0_47 = arith.constant 0 : index
      %c0_48 = arith.constant 0 : index
      %c0_49 = arith.constant 0 : index
      %46 = vector.load %arg6[%c0_46, %c0_47, %c0_48, %c0_49] : memref<1x2x16x128xf32, #tpu.memory_space<vmem>>, vector<1x2x16x128xf32>
      %47 = vector.shape_cast %46 : vector<1x2x16x128xf32> to vector<2x16x128xf32>
      %48 = vector.shape_cast %45 : vector<2x16x128xf32> to vector<1x2x16x128xf32>
      tpu.vector_store %arg6[%c0_46, %c0_47, %c0_48, %c0_49], %48 {strides = array<i32>} : memref<1x2x16x128xf32, #tpu.memory_space<vmem>>, vector<1x2x16x128xf32>,
    } else {
    }
    return
  }
  func.func @transform_0(%arg0: i32, %arg1: i32, %arg2: i32) -> (i32, i32, i32, i32, i32) {
    %c0_i32 = arith.constant 0 : i32
    %c0_i32_0 = arith.constant 0 : i32
    %c0_i32_1 = arith.constant 0 : i32
    %c0_i32_2 = arith.constant 0 : i32
    return %arg0, %c0_i32, %arg1, %c0_i32_0, %c0_i32_1 : i32, i32, i32, i32, i32
  }
  func.func @transform_1(%arg0: i32, %arg1: i32, %arg2: i32) -> (i32, i32, i32, i32, i32) {
    %c1_i32 = arith.constant 1 : i32
    %c0_i32 = arith.constant 0 : i32
    %c0_i32_0 = arith.constant 0 : i32
    return %arg0, %c1_i32, %arg1, %c0_i32, %arg2 : i32, i32, i32, i32, i32
  }
  func.func @transform_2(%arg0: i32, %arg1: i32, %arg2: i32) -> (i32, i32, i32, i32, i32) {
    %c2_i32 = arith.constant 2 : i32
    %c0_i32 = arith.constant 0 : i32
    %c0_i32_0 = arith.constant 0 : i32
    return %arg0, %c2_i32, %arg1, %c0_i32, %arg2 : i32, i32, i32, i32, i32
  }
  func.func @transform_3(%arg0: i32, %arg1: i32, %arg2: i32) -> (i32, i32, i32, i32) {
    %c0_i32 = arith.constant 0 : i32
    %c0_i32_0 = arith.constant 0 : i32
    %c0_i32_1 = arith.constant 0 : i32
    return %arg0, %arg1, %c0_i32, %c0_i32_0 : i32, i32, i32, i32
  }
}

</mosaic_0001>

<llo_original>
// kernel: tpu_custom_call.1
$region0: #{tpu_custom_call.1}
  #allocation0 [shape = 'u32[]', space=smem, size = 0x4, offset = 0x4, fixed_abs, tag = 'smem constant byte address 0x4 - core index']
  #allocation1 [shape = 'u32[144,128]{1,0:T(1,128)}', space=vmem, size = 0x12000, scoped, tag = 'internal scratch']
  #allocation2 [shape = 'f32[2,1,128]{2,1,0:T(1,128)}', space=vmem, size = 0x400, scoped, tag = 'scratch operand']
  #allocation3 [shape = 'f32[2,1,128]{2,1,0:T(1,128)}', space=vmem, size = 0x400, scoped, tag = 'scratch operand']
  #allocation4 [shape = 'f32[2,16,128]{2,1,0:T(8,128)}', space=vmem, size = 0x4000, scoped, tag = 'scratch operand']
  %s0 = inlined_call_operand.hbm [shape: f32[2,3,4,16,128], index: 0, kind: input, shape index: {}]
  %s1 = inlined_call_operand.hbm [shape: f32[2,3,4,16,128], index: 1, kind: input, shape index: {}]
  %s2 = inlined_call_operand.hbm [shape: f32[2,3,4,16,128], index: 2, kind: input, shape index: {}]
  %s3 = inlined_call_operand.hbm [shape: f32[2,4,16,128], index: 3, kind: output, shape index: {}]
  %s4 = sld [smem:[#allocation0]]
  $region65: #{tpu_custom_call.1} parent=0
    _
  %s6 = ssub.s32 1, %s4
  %s7 = scalar_select 0, %s6, %s4
  $region1: #{tpu_custom_call.1} parent=0
    #allocation5 [shape = 'u8[32768]{0}', space=vmem, size = 0x8000, scoped, tag = 'input window, operand 0']
    #allocation6 [shape = 's32[2]{0}', space=sflag, size = 0x8, scoped, tag = 'scoped memory for tpu_custom_call.1']
    #allocation7 [shape = 's32[2]{0}', space=sflag, size = 0x8, scoped, tag = 'scoped memory for tpu_custom_call.1']
    #allocation8 [shape = 'u8[32768]{0}', space=vmem, size = 0x8000, scoped, tag = 'input window, operand 1']
    #allocation9 [shape = 's32[2]{0}', space=sflag, size = 0x8, scoped, tag = 'scoped memory for tpu_custom_call.1']
    #allocation10 [shape = 'u8[32768]{0}', space=vmem, size = 0x8000, scoped, tag = 'input window, operand 2']
    #allocation11 [shape = 'u8[32768]{0}', space=vmem, size = 0x8000, scoped, tag = 'output window, operand 0']
    %8 = vsyncpa [#allocation6], 0
    %s9 = scalar_lea.sflag [#allocation6], 1
    %10 = vsyncpa %s9, 0
    %11 = vsyncpa [#allocation9], 0
    %s12 = scalar_lea.sflag [#allocation9], 1
    %13 = vsyncpa %s12, 0
    %14 = vsyncpa [#allocation7], 0
    %s15 = scalar_lea.sflag [#allocation7], 1
    %16 = vsyncpa %s15, 0
    loop: start=0, step=1, limit=6
    $region2: #{tpu_custom_call.1} parent=1 // loop_pre_header
      _
    $region3: #{tpu_custom_call.1} parent=1 // loop_header
      %s18 = sphi 0, %s22
      %p19 = scmp.ge.s32.totalorder %s18, 6
      %s25 = sphi 0, %s44
      %s26 = sphi 0, %s40
      %s27 = sphi 0, %s36
      %s28 = sphi 0, %s25
      %s29 = sphi 0, %s26
      %s30 = sphi 0, %s27
      %s31 = sphi 0, %s28
      %s32 = sphi 0, %s29
      %s33 = sphi 0, %s30
      %s49 = sphi 0, %s51
      %s52 = sphi 0, %s49
      %s53 = sphi 0, %s52
      %s69 = sphi 0, %s53
      %s79 = sphi 0, %s81
      %s82 = sphi 0, %s79
      %s83 = sphi 0, %s82
      %s99 = sphi 0, %s83
      %s109 = sphi 0, %s111
      %s112 = sphi 0, %s109
      %s113 = sphi 0, %s112
      %s129 = sphi 0, %s113
      %s137 = sphi 0, %s139
      %s140 = sphi 0, %s137
      %s141 = sphi 0, %s140
      %s157 = sphi 0, %s141
    $region4: #{tpu_custom_call.1} parent=1 // loop_header_branch
      %21 = sbr.rel (%p19) target = $region8
    $region5: #{tpu_custom_call.1} parent=1 // loop_body
      %s23 = ssub.s32 %s18, 1
      %s24 = ssub.s32 %s18, 2
      %s34 = sadd.s32 1, %s27
      %p35 = scmp.ge.s32.totalorder %s34, 1
      %s36 = scalar_select %p35, 0, %s34
      %s37 = sadd.s32 1, %s26
      %s38 = scalar_select %p35, %s37, %s26
      %p39 = scmp.ge.s32.totalorder %s38, 2
      %s40 = scalar_select %p39, 0, %s38
      %s41 = sadd.s32 1, %s25
      %s42 = scalar_select %p39, %s41, %s25
      %p43 = scmp.ge.s32.totalorder %s42, 2
      %s44 = scalar_select %p43, 0, %s42
      %s45 = ssub.s32 %s25, %s44
      %s46 = ssub.s32 %s26, %s40
      %s47 = sor.u32 %s45, %s46
      %p48 = scmp.eq.s32.totalorder %s47, 0
      %s50 = sadd.s32 %s49, 1
      %s51 = scalar_select %p48, %s49, %s50
      %p54 = pneg %p48
      %p55 = scmp.eq.s32.totalorder %s18, 3
      %p56 = por %p54, %p55
      %p57 = scmp.ne.s32.totalorder %s49, %s52
      %p58 = scmp.eq.s32.totalorder %s18, 0
      %p59 = por %p57, %p58
      %p60 = scmp.ne.s32.totalorder %s49, %s52
      %p61 = scmp.eq.s32.totalorder %s23, 3
      %p62 = por %p60, %p61
      %p63 = scmp.ne.s32.totalorder %s52, %s53
      %p64 = scmp.eq.s32.totalorder %s23, 0
      %p65 = por %p63, %p64
      %p66 = scmp.ne.s32.totalorder %s52, %s53
      %p67 = scmp.eq.s32.totalorder %s24, 3
      %p68 = por %p66, %p67
      %p70 = scmp.ne.s32.totalorder %s53, %s69
      %p71 = scmp.eq.s32.totalorder %s24, 0
      %p72 = por %p70, %p71
      %s73 = ssub.s32 %s25, %s44
      %s74 = ssub.s32 %s26, %s40
      %s75 = sor.u32 %s73, %s74
      %s76 = ssub.s32 %s27, %s36
      %s77 = sor.u32 %s75, %s76
      %p78 = scmp.eq.s32.totalorder %s77, 0
      %s80 = sadd.s32 %s79, 1
      %s81 = scalar_select %p78, %s79, %s80
      %p84 = pneg %p78
      %p85 = scmp.eq.s32.totalorder %s18, 3
      %p86 = por %p84, %p85
      %p87 = scmp.ne.s32.totalorder %s79, %s82
      %p88 = scmp.eq.s32.totalorder %s18, 0
      %p89 = por %p87, %p88
      %p90 = scmp.ne.s32.totalorder %s79, %s82
      %p91 = scmp.eq.s32.totalorder %s23, 3
      %p92 = por %p90, %p91
      %p93 = scmp.ne.s32.totalorder %s82, %s83
      %p94 = scmp.eq.s32.totalorder %s23, 0
      %p95 = por %p93, %p94
      %p96 = scmp.ne.s32.totalorder %s82, %s83
      %p97 = scmp.eq.s32.totalorder %s24, 3
      %p98 = por %p96, %p97
      %p100 = scmp.ne.s32.totalorder %s83, %s99
      %p101 = scmp.eq.s32.totalorder %s24, 0
      %p102 = por %p100, %p101
      %s103 = ssub.s32 %s25, %s44
      %s104 = ssub.s32 %s26, %s40
      %s105 = sor.u32 %s103, %s104
      %s106 = ssub.s32 %s27, %s36
      %s107 = sor.u32 %s105, %s106
      %p108 = scmp.eq.s32.totalorder %s107, 0
      %s110 = sadd.s32 %s109, 1
      %s111 = scalar_select %p108, %s109, %s110
      %p114 = pneg %p108
      %p115 = scmp.eq.s32.totalorder %s18, 3
      %p116 = por %p114, %p115
      %p117 = scmp.ne.s32.totalorder %s109, %s112
      %p118 = scmp.eq.s32.totalorder %s18, 0
      %p119 = por %p117, %p118
      %p120 = scmp.ne.s32.totalorder %s109, %s112
      %p121 = scmp.eq.s32.totalorder %s23, 3
      %p122 = por %p120, %p121
      %p123 = scmp.ne.s32.totalorder %s112, %s113
      %p124 = scmp.eq.s32.totalorder %s23, 0
      %p125 = por %p123, %p124
      %p126 = scmp.ne.s32.totalorder %s112, %s113
      %p127 = scmp.eq.s32.totalorder %s24, 3
      %p128 = por %p126, %p127
      %p130 = scmp.ne.s32.totalorder %s113, %s129
      %p131 = scmp.eq.s32.totalorder %s24, 0
      %p132 = por %p130, %p131
      %s133 = ssub.s32 %s25, %s44
      %s134 = ssub.s32 %s26, %s40
      %s135 = sor.u32 %s133, %s134
      %p136 = scmp.eq.s32.totalorder %s135, 0
      %s138 = sadd.s32 %s137, 1
      %s139 = scalar_select %p136, %s137, %s138
      %p142 = pneg %p136
      %p143 = scmp.eq.s32.totalorder %s18, 3
      %p144 = por %p142, %p143
      %p145 = scmp.ne.s32.totalorder %s137, %s140
      %p146 = scmp.eq.s32.totalorder %s18, 0
      %p147 = por %p145, %p146
      %p148 = scmp.ne.s32.totalorder %s137, %s140
      %p149 = scmp.eq.s32.totalorder %s23, 3
      %p150 = por %p148, %p149
      %p151 = scmp.ne.s32.totalorder %s140, %s141
      %p152 = scmp.eq.s32.totalorder %s23, 0
      %p153 = por %p151, %p152
      %p154 = scmp.ne.s32.totalorder %s140, %s141
      %p155 = scmp.eq.s32.totalorder %s24, 3
      %p156 = por %p154, %p155
      %p158 = scmp.ne.s32.totalorder %s141, %s157
      %p159 = scmp.eq.s32.totalorder %s24, 0
      %p160 = por %p158, %p159
      %p161 = scmp.le.s32.totalorder 1, %s18
      %p162 = scmp.lt.s32.totalorder %s18, 5
      %p163 = pnand %p161, %p162
      %p164 = pneg %p163
      // Predicated region
      $region9: #{tpu_custom_call.1} parent=5 // pred_check
        _
      $region10: #{tpu_custom_call.1} parent=5 // pred_check_branch
        %166 = sbr.rel (%p163) target = $region12
      $region11: #{tpu_custom_call.1} parent=5 // pred_region
        %s167 = ssub.s32 %s18, 1
      $region12: #{tpu_custom_call.1} parent=5 // pred_fallthru
        _
      %p168 = scmp.lt.s32.totalorder %s18, 4
      // Predicated region
      $region13: #{tpu_custom_call.1} parent=5 // pred_check
        %p169 = pneg %p168
      $region14: #{tpu_custom_call.1} parent=5 // pred_check_branch
        %171 = sbr.rel (%p169) target = $region16
      $region15: #{tpu_custom_call.1} parent=5 // pred_region
        // Predicated region
        $region17: #{tpu_custom_call.1} parent=15 // pred_check
          %p172 = pneg %p59
        $region18: #{tpu_custom_call.1} parent=15 // pred_check_branch
          %174 = sbr.rel (%p172) target = $region20
        $region19: #{tpu_custom_call.1} parent=15 // pred_region
          %s175 = sand.u32 %s49, 1
          %s176 = scalar_lea.sflag [#allocation6], %s175
          %s177 = sand.u32 %s49, 1
          %s178 = smul.addr %s177, 32
          %s179 = scalar_lea.vmem [#allocation5], %s178
          %s180 = smul.u32 2, %s26
          %s182 = ssub.s32 512, 512
          %183 = vsyncadd %s176, %s182
          %s184 = smul.addr %s180, 2
          %s185 = smul.addr %s25, 24
          %s186 = sadd.s32 %s184, %s185
          %s187 = smul.addr %s186, 128
          %s188 = scalar_lea.hbm %s0, %s187
          %s189 = sshll.u32 %s179, 4
          %s190 = int_to_ptr.vmem [resolvable:$true] %s189
          %195 = dma.hbm_to_vmem [thread:$0]  %s188, 512, %s190, %s176, 128, 128, 8
        $region20: #{tpu_custom_call.1} parent=15 // pred_fallthru
          _
        // Predicated region
        $region21: #{tpu_custom_call.1} parent=15 // pred_check
          %p196 = pneg %p89
        $region22: #{tpu_custom_call.1} parent=15 // pred_check_branch
          %198 = sbr.rel (%p196) target = $region24
        $region23: #{tpu_custom_call.1} parent=15 // pred_region
          %s199 = sand.u32 %s18, 1
          %s200 = scalar_lea.sflag [#allocation9], %s199
          %s201 = sand.u32 %s79, 1
          %s202 = smul.addr %s201, 32
          %s203 = scalar_lea.vmem [#allocation8], %s202
          %s204 = smul.u32 2, %s26
          %s206 = ssub.s32 512, 512
          %207 = vsyncadd %s200, %s206
          %s208 = smul.addr %s204, 2
          %s209 = sadd.s32 %s27, %s208
          %s210 = sadd.s32 %s209, 8
          %s211 = smul.addr %s25, 24
          %s212 = sadd.s32 %s210, %s211
          %s213 = smul.addr %s212, 128
          %s214 = scalar_lea.hbm %s1, %s213
          %s215 = sshll.u32 %s203, 4
          %s216 = int_to_ptr.vmem [resolvable:$true] %s215
          %221 = dma.hbm_to_vmem [thread:$0]  %s214, 512, %s216, %s200, 128, 128, 8
        $region24: #{tpu_custom_call.1} parent=15 // pred_fallthru
          _
        // Predicated region
        $region25: #{tpu_custom_call.1} parent=15 // pred_check
          %p222 = pneg %p119
        $region26: #{tpu_custom_call.1} parent=15 // pred_check_branch
          %224 = sbr.rel (%p222) target = $region28
        $region27: #{tpu_custom_call.1} parent=15 // pred_region
          %s225 = sand.u32 %s18, 1
          %s226 = scalar_lea.sflag [#allocation9], %s225
          %s227 = sand.u32 %s109, 1
          %s228 = smul.addr %s227, 32
          %s229 = scalar_lea.vmem [#allocation10], %s228
          %s230 = smul.u32 2, %s26
          %s232 = ssub.s32 512, 512
          %233 = vsyncadd %s226, %s232
          %s234 = smul.addr %s230, 2
          %s235 = sadd.s32 %s27, %s234
          %s236 = sadd.s32 %s235, 16
          %s237 = smul.addr %s25, 24
          %s238 = sadd.s32 %s236, %s237
          %s239 = smul.addr %s238, 128
          %s240 = scalar_lea.hbm %s2, %s239
          %s241 = sshll.u32 %s229, 4
          %s242 = int_to_ptr.vmem [resolvable:$true] %s241
          %247 = dma.hbm_to_vmem [thread:$0]  %s240, 512, %s242, %s226, 128, 128, 8
        $region28: #{tpu_custom_call.1} parent=15 // pred_fallthru
          _
      $region16: #{tpu_custom_call.1} parent=5 // pred_fallthru
        _
      %p248 = scmp.le.s32.totalorder 1, %s18
      %p249 = scmp.lt.s32.totalorder %s18, 5
      %p250 = pnand %p248, %p249
      %p251 = pneg %p250
      // Predicated region
      $region29: #{tpu_custom_call.1} parent=5 // pred_check
        _
      $region30: #{tpu_custom_call.1} parent=5 // pred_check_branch
        %253 = sbr.rel (%p250) target = $region32
      $region31: #{tpu_custom_call.1} parent=5 // pred_region
        %s254 = ssub.s32 %s18, 1
        %s255 = sand.u32 %s52, 1
        %s256 = scalar_lea.sflag [#allocation6], %s255
        %s257 = sand.u32 %s52, 1
        %s258 = smul.addr %s257, 32
        %s259 = scalar_lea.vmem [#allocation5], %s258
        // Predicated region
        $region33: #{tpu_custom_call.1} parent=31 // pred_check
          %p260 = pneg %p65
        $region34: #{tpu_custom_call.1} parent=31 // pred_check_branch
          %262 = sbr.rel (%p260) target = $region36
        $region35: #{tpu_custom_call.1} parent=31 // pred_region
          %263 = dma.done %s256, 512
        $region36: #{tpu_custom_call.1} parent=31 // pred_fallthru
          _
        %s264 = sand.u32 %s23, 1
        %s265 = scalar_lea.sflag [#allocation9], %s264
        %s266 = sand.u32 %s82, 1
        %s267 = smul.addr %s266, 32
        %s268 = scalar_lea.vmem [#allocation8], %s267
        // Predicated region
        $region37: #{tpu_custom_call.1} parent=31 // pred_check
          %p269 = pneg %p95
        $region38: #{tpu_custom_call.1} parent=31 // pred_check_branch
          %271 = sbr.rel (%p269) target = $region40
        $region39: #{tpu_custom_call.1} parent=31 // pred_region
          %272 = dma.done %s265, 512
        $region40: #{tpu_custom_call.1} parent=31 // pred_fallthru
          _
        %s273 = sand.u32 %s23, 1
        %s274 = scalar_lea.sflag [#allocation9], %s273
        %s275 = sand.u32 %s112, 1
        %s276 = smul.addr %s275, 32
        %s277 = scalar_lea.vmem [#allocation10], %s276
        // Predicated region
        $region41: #{tpu_custom_call.1} parent=31 // pred_check
          %p278 = pneg %p125
        $region42: #{tpu_custom_call.1} parent=31 // pred_check_branch
          %280 = sbr.rel (%p278) target = $region44
        $region43: #{tpu_custom_call.1} parent=31 // pred_region
          %281 = dma.done %s274, 512
        $region44: #{tpu_custom_call.1} parent=31 // pred_fallthru
          _
        %s282 = sand.u32 %s52, 1
        %s283 = scalar_lea.sflag [#allocation6], %s282
        %s284 = sand.u32 %s52, 1
        %s285 = smul.addr %s284, 32
        %s286 = scalar_lea.vmem [#allocation5], %s285
        %p287 = pneg %p65
        %p288 = pneg %p62
        %s289 = sand.u32 %s23, 1
        %s290 = scalar_lea.sflag [#allocation9], %s289
        %s291 = sand.u32 %s82, 1
        %s292 = smul.addr %s291, 32
        %s293 = scalar_lea.vmem [#allocation8], %s292
        %p294 = pneg %p95
        %p295 = pneg %p92
        %s296 = sand.u32 %s23, 1
        %s297 = scalar_lea.sflag [#allocation9], %s296
        %s298 = sand.u32 %s112, 1
        %s299 = smul.addr %s298, 32
        %s300 = scalar_lea.vmem [#allocation10], %s299
        %p301 = pneg %p125
        %p302 = pneg %p122
        %p303 = pneg %p153
        %p304 = pneg %p150
        %s305 = sand.u32 %s140, 1
        %s306 = scalar_lea.sflag [#allocation7], %s305
        %s307 = sand.u32 %s140, 1
        %s308 = smul.addr %s307, 32
        %s309 = scalar_lea.vmem [#allocation11], %s308
        %s310 = smul.u32 2, %s29
        %s311 = smul.u32 2, %s29
        %s312 = smul.u32 2, %s29
        %s313 = smul.u32 2, %s29
        %p314 = scmp.eq.s32.totalorder %s30, 0
        // Predicated region
        $region45: #{tpu_custom_call.1} parent=31 // pred_check
          %p315 = pneg %p314
        $region46: #{tpu_custom_call.1} parent=31 // pred_check_branch
          %317 = sbr.rel (%p315) target = $region48
        $region47: #{tpu_custom_call.1} parent=31 // pred_region
          %318 = vst [vmem:[#allocation2] sm:$0x1] -inf
          %319 = vst [vmem:[#allocation2 + $0x1] sm:$0x1] -inf
          %320 = vst [vmem:[#allocation3] sm:$0x1] 0.0
          %321 = vst [vmem:[#allocation3 + $0x1] sm:$0x1] 0.0
          %322 = vst [vmem:[#allocation4] sm:$0xff] 0.0
          %323 = vst [vmem:[#allocation4 + $0x8] sm:$0xff] 0.0
          %324 = vst [vmem:[#allocation4 + $0x10] sm:$0xff] 0.0
          %325 = vst [vmem:[#allocation4 + $0x18] sm:$0xff] 0.0
        $region48: #{tpu_custom_call.1} parent=31 // pred_fallthru
          _
        %v326 = vld [vmem:[%s259] sm:$0xff]
        %v327 = vld [vmem:[%s259 + $0x8] sm:$0xff]
        %v328 = vld [vmem:[%s259 + $0x10] sm:$0xff]
        %v329 = vld [vmem:[%s259 + $0x18] sm:$0xff]
        %v330 = vld [vmem:[%s268] sm:$0xff]
        %v331 = vld [vmem:[%s268 + $0x8] sm:$0xff]
        %v332 = vld [vmem:[%s268 + $0x10] sm:$0xff]
        %v333 = vld [vmem:[%s268 + $0x18] sm:$0xff]
        %v334 = vld [vmem:[%s277] sm:$0xff]
        %v335 = vld [vmem:[%s277 + $0x8] sm:$0xff]
        %v336 = vld [vmem:[%s277 + $0x10] sm:$0xff]
        %v337 = vld [vmem:[%s277 + $0x18] sm:$0xff]
        %v338 = vmul.f32 %v330, 0.25
        %v339 = vmul.f32 %v331, 0.25
        %v340 = vmul.f32 %v332, 0.25
        %v341 = vmul.f32 %v333, 0.25
        %342 = vxpose.xlu0.b32.start [1/16] %v338, 128
        %343 = vxpose.xlu0.b32.cont [2/16] %v339, 128
        %344 = vxpose.xlu0.b32.cont [3/16] 0.0, 128
        %345 = vxpose.xlu0.b32.cont [4/16] 0.0, 128
        %346 = vxpose.xlu0.b32.cont [5/16] 0.0, 128
        %347 = vxpose.xlu0.b32.cont [6/16] 0.0, 128
        %348 = vxpose.xlu0.b32.cont [7/16] 0.0, 128
        %349 = vxpose.xlu0.b32.cont [8/16] 0.0, 128
        %350 = vxpose.xlu0.b32.cont [9/16] 0.0, 128
        %351 = vxpose.xlu0.b32.cont [10/16] 0.0, 128
        %352 = vxpose.xlu0.b32.cont [11/16] 0.0, 128
        %353 = vxpose.xlu0.b32.cont [12/16] 0.0, 128
        %354 = vxpose.xlu0.b32.cont [13/16] 0.0, 128
        %355 = vxpose.xlu0.b32.cont [14/16] 0.0, 128
        %356 = vxpose.xlu0.b32.cont [15/16] 0.0, 128
        %357 = vxpose.xlu0.b32.end [16/16] 0.0, 128
        %v358 = vpop.trf.xlu0
        %v359 = vpop.trf.xlu0
        %v360 = vpop.trf.xlu0
        %v361 = vpop.trf.xlu0
        %v362 = vpop.trf.xlu0
        %v363 = vpop.trf.xlu0
        %v364 = vpop.trf.xlu0
        %v365 = vpop.trf.xlu0
        %v366 = vpop.trf.xlu0
        %v367 = vpop.trf.xlu0
        %v368 = vpop.trf.xlu0
        %v369 = vpop.trf.xlu0
        %v370 = vpop.trf.xlu0
        %v371 = vpop.trf.xlu0
        %v372 = vpop.trf.xlu0
        %v373 = vpop.trf.xlu0
        %vm374 = vcmask 130048
        %v376 = vsel %vm374, %v358, 0
        %v379 = vsel %vm374, %v359, 0
        %v382 = vsel %vm374, %v360, 0
        %v385 = vsel %vm374, %v361, 0
        %v388 = vsel %vm374, %v362, 0
        %v391 = vsel %vm374, %v363, 0
        %v394 = vsel %vm374, %v364, 0
        %v397 = vsel %vm374, %v365, 0
        %v400 = vsel %vm374, %v366, 0
        %v403 = vsel %vm374, %v367, 0
        %v406 = vsel %vm374, %v368, 0
        %v409 = vsel %vm374, %v369, 0
        %v412 = vsel %vm374, %v370, 0
        %v415 = vsel %vm374, %v371, 0
        %v418 = vsel %vm374, %v372, 0
        %v421 = vsel %vm374, %v373, 0
        %423 = vmatprep.subr.mxu0 0.0
        %424 = vmatpush1.msra.mxu0 %v326
        %425 = vmatprep.subr.mxu0 0.0
        %426 = vmatpush1.msra.mxu0 %v327
        %427 = vmatprep.subr.mxu0 0.0
        %428 = vmatpush1.msra.mxu0 0.0
        %429 = vmatprep.subr.mxu0 0.0
        %430 = vmatpush1.msra.mxu0 0.0
        %431 = vmatprep.subr.mxu0 0.0
        %432 = vmatpush1.msra.mxu0 0.0
        %433 = vmatprep.subr.mxu0 0.0
        %434 = vmatpush1.msra.mxu0 0.0
        %435 = vmatprep.subr.mxu0 0.0
        %436 = vmatpush1.msra.mxu0 0.0
        %437 = vmatprep.subr.mxu0 0.0
        %438 = vmatpush1.msra.mxu0 0.0
        %439 = vmatprep.subr.mxu0 0.0
        %440 = vmatpush1.msra.mxu0 0.0
        %441 = vmatprep.subr.mxu0 0.0
        %442 = vmatpush1.msra.mxu0 0.0
        %443 = vmatprep.subr.mxu0 0.0
        %444 = vmatpush1.msra.mxu0 0.0
        %445 = vmatprep.subr.mxu0 0.0
        %446 = vmatpush1.msra.mxu0 0.0
        %447 = vmatprep.subr.mxu0 0.0
        %448 = vmatpush1.msra.mxu0 0.0
        %449 = vmatprep.subr.mxu0 0.0
        %450 = vmatpush1.msra.mxu0 0.0
        %451 = vmatprep.subr.mxu0 0.0
        %452 = vmatpush1.msra.mxu0 0.0
        %453 = vmatprep.subr.mxu0 0.0
        %454 = vmatpush1.msra.mxu0 0.0
        %455 = vmatprep.subr.mxu0 0.0
        %456 = vmatpush1.msra.mxu0 0.0
        %457 = vmatprep.subr.mxu0 0.0
        %458 = vmatpush1.msra.mxu0 0.0
        %459 = vmatprep.subr.mxu0 0.0
        %460 = vmatpush1.msra.mxu0 0.0
        %461 = vmatprep.subr.mxu0 0.0
        %462 = vmatpush1.msra.mxu0 0.0
        %463 = vmatprep.subr.mxu0 0.0
        %464 = vmatpush1.msra.mxu0 0.0
        %465 = vmatprep.subr.mxu0 0.0
        %466 = vmatpush1.msra.mxu0 0.0
        %467 = vmatprep.subr.mxu0 0.0
        %468 = vmatpush1.msra.mxu0 0.0
        %469 = vmatprep.subr.mxu0 0.0
        %470 = vmatpush1.msra.mxu0 0.0
        %471 = vmatprep.subr.mxu0 0.0
        %472 = vmatpush1.msra.mxu0 0.0
        %473 = vmatprep.subr.mxu0 0.0
        %474 = vmatpush1.msra.mxu0 0.0
        %475 = vmatprep.subr.mxu0 0.0
        %476 = vmatpush1.msra.mxu0 0.0
        %477 = vmatprep.subr.mxu0 0.0
        %478 = vmatpush1.msra.mxu0 0.0
        %479 = vmatprep.subr.mxu0 0.0
        %480 = vmatpush1.msra.mxu0 0.0
        %481 = vmatprep.subr.mxu0 0.0
        %482 = vmatpush1.msra.mxu0 0.0
        %483 = vmatprep.subr.mxu0 0.0
        %484 = vmatpush1.msra.mxu0 0.0
        %485 = vmatprep.subr.mxu0 0.0
        %486 = vmatpush1.msra.mxu0 0.0
        %487 = vmatprep.mubr.f32.mxu0 0.0
        %488 = vmatmul.mubr.f32.gmra.mrb[0].mxu0 %v376
        %v489 = vpop.f32.mrb[0].mxu0
        %v490 = vadd.f32 0.0, %v489
        %v491 = vpop.f32.mrb[0].mxu0
        %492 = vmatprep.mubr.f32.mxu0 0.0
        %493 = vmatmul.mubr.f32.gmra.mrb[0].mxu0 %v379
        %v494 = vpop.f32.mrb[0].mxu0
        %v495 = vadd.f32 0.0, %v494
        %v496 = vpop.f32.mrb[0].mxu0
        %497 = vmatprep.mubr.f32.mxu0 0.0
        %498 = vmatmul.mubr.f32.gmra.mrb[0].mxu0 %v382
        %v499 = vpop.f32.mrb[0].mxu0
        %v500 = vadd.f32 0.0, %v499
        %v501 = vpop.f32.mrb[0].mxu0
        %502 = vmatprep.mubr.f32.mxu0 0.0
        %503 = vmatmul.mubr.f32.gmra.mrb[0].mxu0 %v385
        %v504 = vpop.f32.mrb[0].mxu0
        %v505 = vadd.f32 0.0, %v504
        %v506 = vpop.f32.mrb[0].mxu0
        %507 = vmatprep.mubr.f32.mxu0 0.0
        %508 = vmatmul.mubr.f32.gmra.mrb[0].mxu0 %v388
        %v509 = vpop.f32.mrb[0].mxu0
        %v510 = vadd.f32 0.0, %v509
        %v511 = vpop.f32.mrb[0].mxu0
        %512 = vmatprep.mubr.f32.mxu0 0.0
        %513 = vmatmul.mubr.f32.gmra.mrb[0].mxu0 %v391
        %v514 = vpop.f32.mrb[0].mxu0
        %v515 = vadd.f32 0.0, %v514
        %v516 = vpop.f32.mrb[0].mxu0
        %517 = vmatprep.mubr.f32.mxu0 0.0
        %518 = vmatmul.mubr.f32.gmra.mrb[0].mxu0 %v394
        %v519 = vpop.f32.mrb[0].mxu0
        %v520 = vadd.f32 0.0, %v519
        %v521 = vpop.f32.mrb[0].mxu0
        %522 = vmatprep.mubr.f32.mxu0 0.0
        %523 = vmatmul.mubr.f32.gmra.mrb[0].mxu0 %v397
        %v524 = vpop.f32.mrb[0].mxu0
        %v525 = vadd.f32 0.0, %v524
        %v526 = vpop.f32.mrb[0].mxu0
        %527 = vmatprep.mubr.f32.mxu0 0.0
        %528 = vmatmul.mubr.f32.gmra.mrb[0].mxu0 %v400
        %v529 = vpop.f32.mrb[0].mxu0
        %v530 = vadd.f32 0.0, %v529
        %v531 = vpop.f32.mrb[0].mxu0
        %532 = vmatprep.mubr.f32.mxu0 0.0
        %533 = vmatmul.mubr.f32.gmra.mrb[0].mxu0 %v403
        %v534 = vpop.f32.mrb[0].mxu0
        %v535 = vadd.f32 0.0, %v534
        %v536 = vpop.f32.mrb[0].mxu0
        %537 = vmatprep.mubr.f32.mxu0 0.0
        %538 = vmatmul.mubr.f32.gmra.mrb[0].mxu0 %v406
        %v539 = vpop.f32.mrb[0].mxu0
        %v540 = vadd.f32 0.0, %v539
        %v541 = vpop.f32.mrb[0].mxu0
        %542 = vmatprep.mubr.f32.mxu0 0.0
        %543 = vmatmul.mubr.f32.gmra.mrb[0].mxu0 %v409
        %v544 = vpop.f32.mrb[0].mxu0
        %v545 = vadd.f32 0.0, %v544
        %v546 = vpop.f32.mrb[0].mxu0
        %547 = vmatprep.mubr.f32.mxu0 0.0
        %548 = vmatmul.mubr.f32.gmra.mrb[0].mxu0 %v412
        %v549 = vpop.f32.mrb[0].mxu0
        %v550 = vadd.f32 0.0, %v549
        %v551 = vpop.f32.mrb[0].mxu0
        %552 = vmatprep.mubr.f32.mxu0 0.0
        %553 = vmatmul.mubr.f32.gmra.mrb[0].mxu0 %v415
        %v554 = vpop.f32.mrb[0].mxu0
        %v555 = vadd.f32 0.0, %v554
        %v556 = vpop.f32.mrb[0].mxu0
        %557 = vmatprep.mubr.f32.mxu0 0.0
        %558 = vmatmul.mubr.f32.gmra.mrb[0].mxu0 %v418
        %v559 = vpop.f32.mrb[0].mxu0
        %v560 = vadd.f32 0.0, %v559
        %v561 = vpop.f32.mrb[0].mxu0
        %562 = vmatprep.mubr.f32.mxu0 0.0
        %563 = vmatmul.mubr.f32.gmra.mrb[0].mxu0 %v421
        %v564 = vpop.f32.mrb[0].mxu0
        %v565 = vadd.f32 0.0, %v564
        %v566 = vpop.f32.mrb[0].mxu0
        %567 = vdwg.mxu0
        %568 = vxpose.xlu0.b32.start [1/16] %v340, 128
        %569 = vxpose.xlu0.b32.cont [2/16] %v341, 128
        %570 = vxpose.xlu0.b32.cont [3/16] 0.0, 128
        %571 = vxpose.xlu0.b32.cont [4/16] 0.0, 128
        %572 = vxpose.xlu0.b32.cont [5/16] 0.0, 128
        %573 = vxpose.xlu0.b32.cont [6/16] 0.0, 128
        %574 = vxpose.xlu0.b32.cont [7/16] 0.0, 128
        %575 = vxpose.xlu0.b32.cont [8/16] 0.0, 128
        %576 = vxpose.xlu0.b32.cont [9/16] 0.0, 128
        %577 = vxpose.xlu0.b32.cont [10/16] 0.0, 128
        %578 = vxpose.xlu0.b32.cont [11/16] 0.0, 128
        %579 = vxpose.xlu0.b32.cont [12/16] 0.0, 128
        %580 = vxpose.xlu0.b32.cont [13/16] 0.0, 128
        %581 = vxpose.xlu0.b32.cont [14/16] 0.0, 128
        %582 = vxpose.xlu0.b32.cont [15/16] 0.0, 128
        %583 = vxpose.xlu0.b32.end [16/16] 0.0, 128
        %v584 = vpop.trf.xlu0
        %v585 = vpop.trf.xlu0
        %v586 = vpop.trf.xlu0
        %v587 = vpop.trf.xlu0
        %v588 = vpop.trf.xlu0
        %v589 = vpop.trf.xlu0
        %v590 = vpop.trf.xlu0
        %v591 = vpop.trf.xlu0
        %v592 = vpop.trf.xlu0
        %v593 = vpop.trf.xlu0
        %v594 = vpop.trf.xlu0
        %v595 = vpop.trf.xlu0
        %v596 = vpop.trf.xlu0
        %v597 = vpop.trf.xlu0
        %v598 = vpop.trf.xlu0
        %v599 = vpop.trf.xlu0
        %v601 = vsel %vm374, %v584, 0
        %v604 = vsel %vm374, %v585, 0
        %v607 = vsel %vm374, %v586, 0
        %v610 = vsel %vm374, %v587, 0
        %v613 = vsel %vm374, %v588, 0
        %v616 = vsel %vm374, %v589, 0
        %v619 = vsel %vm374, %v590, 0
        %v622 = vsel %vm374, %v591, 0
        %v625 = vsel %vm374, %v592, 0
        %v628 = vsel %vm374, %v593, 0
        %v631 = vsel %vm374, %v594, 0
        %v634 = vsel %vm374, %v595, 0
        %v637 = vsel %vm374, %v596, 0
        %v640 = vsel %vm374, %v597, 0
        %v643 = vsel %vm374, %v598, 0
        %v646 = vsel %vm374, %v599, 0
        %648 = vmatprep.subr.mxu0 0.0
        %649 = vmatpush1.msra.mxu0 %v328
        %650 = vmatprep.subr.mxu0 0.0
        %651 = vmatpush1.msra.mxu0 %v329
        %652 = vmatprep.subr.mxu0 0.0
        %653 = vmatpush1.msra.mxu0 0.0
        %654 = vmatprep.subr.mxu0 0.0
        %655 = vmatpush1.msra.mxu0 0.0
        %656 = vmatprep.subr.mxu0 0.0
        %657 = vmatpush1.msra.mxu0 0.0
        %658 = vmatprep.subr.mxu0 0.0
        %659 = vmatpush1.msra.mxu0 0.0
        %660 = vmatprep.subr.mxu0 0.0
        %661 = vmatpush1.msra.mxu0 0.0
        %662 = vmatprep.subr.mxu0 0.0
        %663 = vmatpush1.msra.mxu0 0.0
        %664 = vmatprep.subr.mxu0 0.0
        %665 = vmatpush1.msra.mxu0 0.0
        %666 = vmatprep.subr.mxu0 0.0
        %667 = vmatpush1.msra.mxu0 0.0
        %668 = vmatprep.subr.mxu0 0.0
        %669 = vmatpush1.msra.mxu0 0.0
        %670 = vmatprep.subr.mxu0 0.0
        %671 = vmatpush1.msra.mxu0 0.0
        %672 = vmatprep.subr.mxu0 0.0
        %673 = vmatpush1.msra.mxu0 0.0
        %674 = vmatprep.subr.mxu0 0.0
        %675 = vmatpush1.msra.mxu0 0.0
        %676 = vmatprep.subr.mxu0 0.0
        %677 = vmatpush1.msra.mxu0 0.0
        %678 = vmatprep.subr.mxu0 0.0
        %679 = vmatpush1.msra.mxu0 0.0
        %680 = vmatprep.subr.mxu0 0.0
        %681 = vmatpush1.msra.mxu0 0.0
        %682 = vmatprep.subr.mxu0 0.0
        %683 = vmatpush1.msra.mxu0 0.0
        %684 = vmatprep.subr.mxu0 0.0
        %685 = vmatpush1.msra.mxu0 0.0
        %686 = vmatprep.subr.mxu0 0.0
        %687 = vmatpush1.msra.mxu0 0.0
        %688 = vmatprep.subr.mxu0 0.0
        %689 = vmatpush1.msra.mxu0 0.0
        %690 = vmatprep.subr.mxu0 0.0
        %691 = vmatpush1.msra.mxu0 0.0
        %692 = vmatprep.subr.mxu0 0.0
        %693 = vmatpush1.msra.mxu0 0.0
        %694 = vmatprep.subr.mxu0 0.0
        %695 = vmatpush1.msra.mxu0 0.0
        %696 = vmatprep.subr.mxu0 0.0
        %697 = vmatpush1.msra.mxu0 0.0
        %698 = vmatprep.subr.mxu0 0.0
        %699 = vmatpush1.msra.mxu0 0.0
        %700 = vmatprep.subr.mxu0 0.0
        %701 = vmatpush1.msra.mxu0 0.0
        %702 = vmatprep.subr.mxu0 0.0
        %703 = vmatpush1.msra.mxu0 0.0
        %704 = vmatprep.subr.mxu0 0.0
        %705 = vmatpush1.msra.mxu0 0.0
        %706 = vmatprep.subr.mxu0 0.0
        %707 = vmatpush1.msra.mxu0 0.0
        %708 = vmatprep.subr.mxu0 0.0
        %709 = vmatpush1.msra.mxu0 0.0
        %710 = vmatprep.subr.mxu0 0.0
        %711 = vmatpush1.msra.mxu0 0.0
        %712 = vmatprep.mubr.f32.mxu0 0.0
        %713 = vmatmul.mubr.f32.gmra.mrb[0].mxu0 %v601
        %v714 = vpop.f32.mrb[0].mxu0
        %v715 = vadd.f32 0.0, %v714
        %v716 = vpop.f32.mrb[0].mxu0
        %717 = vmatprep.mubr.f32.mxu0 0.0
        %718 = vmatmul.mubr.f32.gmra.mrb[0].mxu0 %v604
        %v719 = vpop.f32.mrb[0].mxu0
        %v720 = vadd.f32 0.0, %v719
        %v721 = vpop.f32.mrb[0].mxu0
        %722 = vmatprep.mubr.f32.mxu0 0.0
        %723 = vmatmul.mubr.f32.gmra.mrb[0].mxu0 %v607
        %v724 = vpop.f32.mrb[0].mxu0
        %v725 = vadd.f32 0.0, %v724
        %v726 = vpop.f32.mrb[0].mxu0
        %727 = vmatprep.mubr.f32.mxu0 0.0
        %728 = vmatmul.mubr.f32.gmra.mrb[0].mxu0 %v610
        %v729 = vpop.f32.mrb[0].mxu0
        %v730 = vadd.f32 0.0, %v729
        %v731 = vpop.f32.mrb[0].mxu0
        %732 = vmatprep.mubr.f32.mxu0 0.0
        %733 = vmatmul.mubr.f32.gmra.mrb[0].mxu0 %v613
        %v734 = vpop.f32.mrb[0].mxu0
        %v735 = vadd.f32 0.0, %v734
        %v736 = vpop.f32.mrb[0].mxu0
        %737 = vmatprep.mubr.f32.mxu0 0.0
        %738 = vmatmul.mubr.f32.gmra.mrb[0].mxu0 %v616
        %v739 = vpop.f32.mrb[0].mxu0
        %v740 = vadd.f32 0.0, %v739
        %v741 = vpop.f32.mrb[0].mxu0
        %742 = vmatprep.mubr.f32.mxu0 0.0
        %743 = vmatmul.mubr.f32.gmra.mrb[0].mxu0 %v619
        %v744 = vpop.f32.mrb[0].mxu0
        %v745 = vadd.f32 0.0, %v744
        %v746 = vpop.f32.mrb[0].mxu0
        %747 = vmatprep.mubr.f32.mxu0 0.0
        %748 = vmatmul.mubr.f32.gmra.mrb[0].mxu0 %v622
        %v749 = vpop.f32.mrb[0].mxu0
        %v750 = vadd.f32 0.0, %v749
        %v751 = vpop.f32.mrb[0].mxu0
        %752 = vmatprep.mubr.f32.mxu0 0.0
        %753 = vmatmul.mubr.f32.gmra.mrb[0].mxu0 %v625
        %v754 = vpop.f32.mrb[0].mxu0
        %v755 = vadd.f32 0.0, %v754
        %v756 = vpop.f32.mrb[0].mxu0
        %757 = vmatprep.mubr.f32.mxu0 0.0
        %758 = vmatmul.mubr.f32.gmra.mrb[0].mxu0 %v628
        %v759 = vpop.f32.mrb[0].mxu0
        %v760 = vadd.f32 0.0, %v759
        %v761 = vpop.f32.mrb[0].mxu0
        %762 = vmatprep.mubr.f32.mxu0 0.0
        %763 = vmatmul.mubr.f32.gmra.mrb[0].mxu0 %v631
        %v764 = vpop.f32.mrb[0].mxu0
        %v765 = vadd.f32 0.0, %v764
        %v766 = vpop.f32.mrb[0].mxu0
        %767 = vmatprep.mubr.f32.mxu0 0.0
        %768 = vmatmul.mubr.f32.gmra.mrb[0].mxu0 %v634
        %v769 = vpop.f32.mrb[0].mxu0
        %v770 = vadd.f32 0.0, %v769
        %v771 = vpop.f32.mrb[0].mxu0
        %772 = vmatprep.mubr.f32.mxu0 0.0
        %773 = vmatmul.mubr.f32.gmra.mrb[0].mxu0 %v637
        %v774 = vpop.f32.mrb[0].mxu0
        %v775 = vadd.f32 0.0, %v774
        %v776 = vpop.f32.mrb[0].mxu0
        %777 = vmatprep.mubr.f32.mxu0 0.0
        %778 = vmatmul.mubr.f32.gmra.mrb[0].mxu0 %v640
        %v779 = vpop.f32.mrb[0].mxu0
        %v780 = vadd.f32 0.0, %v779
        %v781 = vpop.f32.mrb[0].mxu0
        %782 = vmatprep.mubr.f32.mxu0 0.0
        %783 = vmatmul.mubr.f32.gmra.mrb[0].mxu0 %v643
        %v784 = vpop.f32.mrb[0].mxu0
        %v785 = vadd.f32 0.0, %v784
        %v786 = vpop.f32.mrb[0].mxu0
        %787 = vmatprep.mubr.f32.mxu0 0.0
        %788 = vmatmul.mubr.f32.gmra.mrb[0].mxu0 %v646
        %v789 = vpop.f32.mrb[0].mxu0
        %v790 = vadd.f32 0.0, %v789
        %v791 = vpop.f32.mrb[0].mxu0
        %792 = vdwg.mxu0
        %v793 = vld [vmem:[#allocation2] sm:$0x1]
        %v794 = vld [vmem:[#allocation2 + $0x1] sm:$0x1]
        %v795 = vmax.f32 %v490, %v500
        %v796 = vmax.f32 %v495, %v505
        %v797 = vmax.f32 %v795, %v510
        %v798 = vmax.f32 %v796, %v515
        %v799 = vmax.f32 %v797, %v520
        %v800 = vmax.f32 %v798, %v525
        %v801 = vmax.f32 %v799, %v530
        %v802 = vmax.f32 %v800, %v535
        %v803 = vmax.f32 %v801, %v540
        %v804 = vmax.f32 %v802, %v545
        %v805 = vmax.f32 %v803, %v550
        %v806 = vmax.f32 %v804, %v555
        %v807 = vmax.f32 %v805, %v560
        %v808 = vmax.f32 %v806, %v565
        %v809 = vmax.f32 %v807, %v808
        %v810 = vrot.slane %v809, 4
        %v811 = vmax.f32 %v809, %v810
        %v812 = vrot.slane %v811, 2
        %v813 = vmax.f32 %v811, %v812
        %v814 = vrot.slane %v813, 1
        %v815 = vmax.f32 %v813, %v814
        %v816 = vmax.f32 %v715, %v725
        %v817 = vmax.f32 %v720, %v730
        %v818 = vmax.f32 %v816, %v735
        %v819 = vmax.f32 %v817, %v740
        %v820 = vmax.f32 %v818, %v745
        %v821 = vmax.f32 %v819, %v750
        %v822 = vmax.f32 %v820, %v755
        %v823 = vmax.f32 %v821, %v760
        %v824 = vmax.f32 %v822, %v765
        %v825 = vmax.f32 %v823, %v770
        %v826 = vmax.f32 %v824, %v775
        %v827 = vmax.f32 %v825, %v780
        %v828 = vmax.f32 %v826, %v785
        %v829 = vmax.f32 %v827, %v790
        %v830 = vmax.f32 %v828, %v829
        %v831 = vrot.slane %v830, 4
        %v832 = vmax.f32 %v830, %v831
        %v833 = vrot.slane %v832, 2
        %v834 = vmax.f32 %v832, %v833
        %v835 = vrot.slane %v834, 1
        %v836 = vmax.f32 %v834, %v835
        %v837 = vmax.f32 %v793, %v815
        %v838 = vmax.f32 %v794, %v836
        %v839 = vsub.f32 %v793, %v837
        %v840 = vsub.f32 %v794, %v838
        %v841 = vmul.f32 %v839, 1.442695
        %v842 = vpow.pop %v841
        %v843 = vmul.f32 %v840, 1.442695
        %v844 = vpow.pop %v843
        %v847 = vlaneseq
        %v848 = vshrl.u32 %v847, 7
        %v849 = vsub.s32 0, %v848
        %v850 = vrot.slane %v837, %v849
        %v851 = vlaneseq
        %v852 = vshrl.u32 %v851, 7
        %v853 = vsub.s32 0, %v852
        %v854 = vrot.slane %v838, %v853
        %v857 = vsub.f32 %v490, %v850
        %v858 = vsub.f32 %v495, %v850
        %v859 = vsub.f32 %v500, %v850
        %v860 = vsub.f32 %v505, %v850
        %v861 = vsub.f32 %v510, %v850
        %v862 = vsub.f32 %v515, %v850
        %v863 = vsub.f32 %v520, %v850
        %v864 = vsub.f32 %v525, %v850
        %v865 = vsub.f32 %v530, %v850
        %v866 = vsub.f32 %v535, %v850
        %v867 = vsub.f32 %v540, %v850
        %v868 = vsub.f32 %v545, %v850
        %v869 = vsub.f32 %v550, %v850
        %v870 = vsub.f32 %v555, %v850
        %v871 = vsub.f32 %v560, %v850
        %v872 = vsub.f32 %v565, %v850
        %v873 = vsub.f32 %v715, %v854
        %v874 = vsub.f32 %v720, %v854
        %v875 = vsub.f32 %v725, %v854
        %v876 = vsub.f32 %v730, %v854
        %v877 = vsub.f32 %v735, %v854
        %v878 = vsub.f32 %v740, %v854
        %v879 = vsub.f32 %v745, %v854
        %v880 = vsub.f32 %v750, %v854
        %v881 = vsub.f32 %v755, %v854
        %v882 = vsub.f32 %v760, %v854
        %v883 = vsub.f32 %v765, %v854
        %v884 = vsub.f32 %v770, %v854
        %v885 = vsub.f32 %v775, %v854
        %v886 = vsub.f32 %v780, %v854
        %v887 = vsub.f32 %v785, %v854
        %v888 = vsub.f32 %v790, %v854
        %v889 = vmul.f32 %v857, 1.442695
        %v890 = vpow.pop %v889
        %v891 = vmul.f32 %v858, 1.442695
        %v892 = vpow.pop %v891
        %v893 = vmul.f32 %v859, 1.442695
        %v894 = vpow.pop %v893
        %v895 = vmul.f32 %v860, 1.442695
        %v896 = vpow.pop %v895
        %v897 = vmul.f32 %v861, 1.442695
        %v898 = vpow.pop %v897
        %v899 = vmul.f32 %v862, 1.442695
        %v900 = vpow.pop %v899
        %v901 = vmul.f32 %v863, 1.442695
        %v902 = vpow.pop %v901
        %v903 = vmul.f32 %v864, 1.442695
        %v904 = vpow.pop %v903
        %v905 = vmul.f32 %v865, 1.442695
        %v906 = vpow.pop %v905
        %v907 = vmul.f32 %v866, 1.442695
        %v908 = vpow.pop %v907
        %v909 = vmul.f32 %v867, 1.442695
        %v910 = vpow.pop %v909
        %v911 = vmul.f32 %v868, 1.442695
        %v912 = vpow.pop %v911
        %v913 = vmul.f32 %v869, 1.442695
        %v914 = vpow.pop %v913
        %v915 = vmul.f32 %v870, 1.442695
        %v916 = vpow.pop %v915
        %v917 = vmul.f32 %v871, 1.442695
        %v918 = vpow.pop %v917
        %v919 = vmul.f32 %v872, 1.442695
        %v920 = vpow.pop %v919
        %v921 = vmul.f32 %v873, 1.442695
        %v922 = vpow.pop %v921
        %v923 = vmul.f32 %v874, 1.442695
        %v924 = vpow.pop %v923
        %v925 = vmul.f32 %v875, 1.442695
        %v926 = vpow.pop %v925
        %v927 = vmul.f32 %v876, 1.442695
        %v928 = vpow.pop %v927
        %v929 = vmul.f32 %v877, 1.442695
        %v930 = vpow.pop %v929
        %v931 = vmul.f32 %v878, 1.442695
        %v932 = vpow.pop %v931
        %v933 = vmul.f32 %v879, 1.442695
        %v934 = vpow.pop %v933
        %v935 = vmul.f32 %v880, 1.442695
        %v936 = vpow.pop %v935
        %v937 = vmul.f32 %v881, 1.442695
        %v938 = vpow.pop %v937
        %v939 = vmul.f32 %v882, 1.442695
        %v940 = vpow.pop %v939
        %v941 = vmul.f32 %v883, 1.442695
        %v942 = vpow.pop %v941
        %v943 = vmul.f32 %v884, 1.442695
        %v944 = vpow.pop %v943
        %v945 = vmul.f32 %v885, 1.442695
        %v946 = vpow.pop %v945
        %v947 = vmul.f32 %v886, 1.442695
        %v948 = vpow.pop %v947
        %v949 = vmul.f32 %v887, 1.442695
        %v950 = vpow.pop %v949
        %v951 = vmul.f32 %v888, 1.442695
        %v952 = vpow.pop %v951
        %v953 = vld [vmem:[#allocation3] sm:$0x1]
        %v954 = vld [vmem:[#allocation3 + $0x1] sm:$0x1]
        %v955 = vmul.f32 %v842, %v953
        %v956 = vmul.f32 %v844, %v954
        %v957 = vadd.f32 %v890, %v892
        %v958 = vadd.f32 %v957, %v894
        %v959 = vadd.f32 %v958, %v896
        %v960 = vadd.f32 %v959, %v898
        %v961 = vadd.f32 %v960, %v900
        %v962 = vadd.f32 %v961, %v902
        %v963 = vadd.f32 %v962, %v904
        %v964 = vadd.f32 %v963, %v906
        %v965 = vadd.f32 %v964, %v908
        %v966 = vadd.f32 %v965, %v910
        %v967 = vadd.f32 %v966, %v912
        %v968 = vadd.f32 %v967, %v914
        %v969 = vadd.f32 %v968, %v916
        %v970 = vadd.f32 %v969, %v918
        %v971 = vadd.f32 %v970, %v920
        %v972 = vrot.slane %v971, 4
        %v973 = vadd.f32 %v971, %v972
        %v974 = vrot.slane %v973, 2
        %v975 = vadd.f32 %v973, %v974
        %v976 = vrot.slane %v975, 1
        %v977 = vadd.f32 %v975, %v976
        %v978 = vadd.f32 %v922, %v924
        %v979 = vadd.f32 %v978, %v926
        %v980 = vadd.f32 %v979, %v928
        %v981 = vadd.f32 %v980, %v930
        %v982 = vadd.f32 %v981, %v932
        %v983 = vadd.f32 %v982, %v934
        %v984 = vadd.f32 %v983, %v936
        %v985 = vadd.f32 %v984, %v938
        %v986 = vadd.f32 %v985, %v940
        %v987 = vadd.f32 %v986, %v942
        %v988 = vadd.f32 %v987, %v944
        %v989 = vadd.f32 %v988, %v946
        %v990 = vadd.f32 %v989, %v948
        %v991 = vadd.f32 %v990, %v950
        %v992 = vadd.f32 %v991, %v952
        %v993 = vrot.slane %v992, 4
        %v994 = vadd.f32 %v992, %v993
        %v995 = vrot.slane %v994, 2
        %v996 = vadd.f32 %v994, %v995
        %v997 = vrot.slane %v996, 1
        %v998 = vadd.f32 %v996, %v997
        %v999 = vadd.f32 %v955, %v977
        %v1000 = vadd.f32 %v956, %v998
        %1001 = vst [vmem:[#allocation3] sm:$0x1] %v999
        %1002 = vst [vmem:[#allocation3 + $0x1] sm:$0x1] %v1000
        %1003 = vst [vmem:[#allocation2] sm:$0x1] %v837
        %1004 = vst [vmem:[#allocation2 + $0x1] sm:$0x1] %v838
        %1005 = vmatprep.subr.mxu0 0.0
        %1006 = vmatpush1.msra.mxu0 %v890
        %1007 = vmatprep.subr.mxu0 0.0
        %1008 = vmatpush1.msra.mxu0 %v892
        %1009 = vmatprep.subr.mxu0 0.0
        %1010 = vmatpush1.msra.mxu0 %v894
        %1011 = vmatprep.subr.mxu0 0.0
        %1012 = vmatpush1.msra.mxu0 %v896
        %1013 = vmatprep.subr.mxu0 0.0
        %1014 = vmatpush1.msra.mxu0 %v898
        %1015 = vmatprep.subr.mxu0 0.0
        %1016 = vmatpush1.msra.mxu0 %v900
        %1017 = vmatprep.subr.mxu0 0.0
        %1018 = vmatpush1.msra.mxu0 %v902
        %1019 = vmatprep.subr.mxu0 0.0
        %1020 = vmatpush1.msra.mxu0 %v904
        %1021 = vmatprep.subr.mxu0 0.0
        %1022 = vmatpush1.msra.mxu0 %v906
        %1023 = vmatprep.subr.mxu0 0.0
        %1024 = vmatpush1.msra.mxu0 %v908
        %1025 = vmatprep.subr.mxu0 0.0
        %1026 = vmatpush1.msra.mxu0 %v910
        %1027 = vmatprep.subr.mxu0 0.0
        %1028 = vmatpush1.msra.mxu0 %v912
        %1029 = vmatprep.subr.mxu0 0.0
        %1030 = vmatpush1.msra.mxu0 %v914
        %1031 = vmatprep.subr.mxu0 0.0
        %1032 = vmatpush1.msra.mxu0 %v916
        %1033 = vmatprep.subr.mxu0 0.0
        %1034 = vmatpush1.msra.mxu0 %v918
        %1035 = vmatprep.subr.mxu0 0.0
        %1036 = vmatpush1.msra.mxu0 %v920
        %1037 = vmatprep.subr.mxu0 0.0
        %1038 = vmatpush1.msra.mxu0 0.0
        %1039 = vmatprep.subr.mxu0 0.0
        %1040 = vmatpush1.msra.mxu0 0.0
        %1041 = vmatprep.subr.mxu0 0.0
        %1042 = vmatpush1.msra.mxu0 0.0
        %1043 = vmatprep.subr.mxu0 0.0
        %1044 = vmatpush1.msra.mxu0 0.0
        %1045 = vmatprep.subr.mxu0 0.0
        %1046 = vmatpush1.msra.mxu0 0.0
        %1047 = vmatprep.subr.mxu0 0.0
        %1048 = vmatpush1.msra.mxu0 0.0
        %1049 = vmatprep.subr.mxu0 0.0
        %1050 = vmatpush1.msra.mxu0 0.0
        %1051 = vmatprep.subr.mxu0 0.0
        %1052 = vmatpush1.msra.mxu0 0.0
        %1053 = vmatprep.subr.mxu0 0.0
        %1054 = vmatpush1.msra.mxu0 0.0
        %1055 = vmatprep.subr.mxu0 0.0
        %1056 = vmatpush1.msra.mxu0 0.0
        %1057 = vmatprep.subr.mxu0 0.0
        %1058 = vmatpush1.msra.mxu0 0.0
        %1059 = vmatprep.subr.mxu0 0.0
        %1060 = vmatpush1.msra.mxu0 0.0
        %1061 = vmatprep.subr.mxu0 0.0
        %1062 = vmatpush1.msra.mxu0 0.0
        %1063 = vmatprep.subr.mxu0 0.0
        %1064 = vmatpush1.msra.mxu0 0.0
        %1065 = vmatprep.subr.mxu0 0.0
        %1066 = vmatpush1.msra.mxu0 0.0
        %1067 = vmatprep.subr.mxu0 0.0
        %1068 = vmatpush1.msra.mxu0 0.0
        %1069 = vmatprep.mubr.f32.mxu0 0.0
        %1070 = vmatmul.mubr.f32.gmra.mrb[0].mxu0 %v334
        %v1071 = vpop.f32.mrb[0].mxu0
        %v1072 = vadd.f32 0.0, %v1071
        %v1073 = vpop.f32.mrb[0].mxu0
        %1074 = vmatprep.mubr.f32.mxu0 0.0
        %1075 = vmatmul.mubr.f32.gmra.mrb[0].mxu0 %v335
        %v1076 = vpop.f32.mrb[0].mxu0
        %v1077 = vadd.f32 0.0, %v1076
        %v1078 = vpop.f32.mrb[0].mxu0
        %1079 = vdwg.mxu0
        %1080 = vmatprep.subr.mxu0 0.0
        %1081 = vmatpush1.msra.mxu0 %v922
        %1082 = vmatprep.subr.mxu0 0.0
        %1083 = vmatpush1.msra.mxu0 %v924
        %1084 = vmatprep.subr.mxu0 0.0
        %1085 = vmatpush1.msra.mxu0 %v926
        %1086 = vmatprep.subr.mxu0 0.0
        %1087 = vmatpush1.msra.mxu0 %v928
        %1088 = vmatprep.subr.mxu0 0.0
        %1089 = vmatpush1.msra.mxu0 %v930
        %1090 = vmatprep.subr.mxu0 0.0
        %1091 = vmatpush1.msra.mxu0 %v932
        %1092 = vmatprep.subr.mxu0 0.0
        %1093 = vmatpush1.msra.mxu0 %v934
        %1094 = vmatprep.subr.mxu0 0.0
        %1095 = vmatpush1.msra.mxu0 %v936
        %1096 = vmatprep.subr.mxu0 0.0
        %1097 = vmatpush1.msra.mxu0 %v938
        %1098 = vmatprep.subr.mxu0 0.0
        %1099 = vmatpush1.msra.mxu0 %v940
        %1100 = vmatprep.subr.mxu0 0.0
        %1101 = vmatpush1.msra.mxu0 %v942
        %1102 = vmatprep.subr.mxu0 0.0
        %1103 = vmatpush1.msra.mxu0 %v944
        %1104 = vmatprep.subr.mxu0 0.0
        %1105 = vmatpush1.msra.mxu0 %v946
        %1106 = vmatprep.subr.mxu0 0.0
        %1107 = vmatpush1.msra.mxu0 %v948
        %1108 = vmatprep.subr.mxu0 0.0
        %1109 = vmatpush1.msra.mxu0 %v950
        %1110 = vmatprep.subr.mxu0 0.0
        %1111 = vmatpush1.msra.mxu0 %v952
        %1112 = vmatprep.subr.mxu0 0.0
        %1113 = vmatpush1.msra.mxu0 0.0
        %1114 = vmatprep.subr.mxu0 0.0
        %1115 = vmatpush1.msra.mxu0 0.0
        %1116 = vmatprep.subr.mxu0 0.0
        %1117 = vmatpush1.msra.mxu0 0.0
        %1118 = vmatprep.subr.mxu0 0.0
        %1119 = vmatpush1.msra.mxu0 0.0
        %1120 = vmatprep.subr.mxu0 0.0
        %1121 = vmatpush1.msra.mxu0 0.0
        %1122 = vmatprep.subr.mxu0 0.0
        %1123 = vmatpush1.msra.mxu0 0.0
        %1124 = vmatprep.subr.mxu0 0.0
        %1125 = vmatpush1.msra.mxu0 0.0
        %1126 = vmatprep.subr.mxu0 0.0
        %1127 = vmatpush1.msra.mxu0 0.0
        %1128 = vmatprep.subr.mxu0 0.0
        %1129 = vmatpush1.msra.mxu0 0.0
        %1130 = vmatprep.subr.mxu0 0.0
        %1131 = vmatpush1.msra.mxu0 0.0
        %1132 = vmatprep.subr.mxu0 0.0
        %1133 = vmatpush1.msra.mxu0 0.0
        %1134 = vmatprep.subr.mxu0 0.0
        %1135 = vmatpush1.msra.mxu0 0.0
        %1136 = vmatprep.subr.mxu0 0.0
        %1137 = vmatpush1.msra.mxu0 0.0
        %1138 = vmatprep.subr.mxu0 0.0
        %1139 = vmatpush1.msra.mxu0 0.0
        %1140 = vmatprep.subr.mxu0 0.0
        %1141 = vmatpush1.msra.mxu0 0.0
        %1142 = vmatprep.subr.mxu0 0.0
        %1143 = vmatpush1.msra.mxu0 0.0
        %1144 = vmatprep.mubr.f32.mxu0 0.0
        %1145 = vmatmul.mubr.f32.gmra.mrb[0].mxu0 %v336
        %v1146 = vpop.f32.mrb[0].mxu0
        %v1147 = vadd.f32 0.0, %v1146
        %v1148 = vpop.f32.mrb[0].mxu0
        %1149 = vmatprep.mubr.f32.mxu0 0.0
        %1150 = vmatmul.mubr.f32.gmra.mrb[0].mxu0 %v337
        %v1151 = vpop.f32.mrb[0].mxu0
        %v1152 = vadd.f32 0.0, %v1151
        %v1153 = vpop.f32.mrb[0].mxu0
        %1154 = vdwg.mxu0
        %v1155 = vld [vmem:[#allocation4] sm:$0xff]
        %v1156 = vld [vmem:[#allocation4 + $0x8] sm:$0xff]
        %v1157 = vld [vmem:[#allocation4 + $0x10] sm:$0xff]
        %v1158 = vld [vmem:[#allocation4 + $0x18] sm:$0xff]
        %v1161 = vlaneseq
        %v1162 = vshrl.u32 %v1161, 7
        %v1163 = vsub.s32 0, %v1162
        %v1164 = vrot.slane %v842, %v1163
        %v1165 = vlaneseq
        %v1166 = vshrl.u32 %v1165, 7
        %v1167 = vsub.s32 0, %v1166
        %v1168 = vrot.slane %v844, %v1167
        %v1171 = vmul.f32 %v1164, %v1155
        %v1172 = vmul.f32 %v1164, %v1156
        %v1173 = vmul.f32 %v1168, %v1157
        %v1174 = vmul.f32 %v1168, %v1158
        %v1175 = vadd.f32 %v1171, %v1072
        %v1176 = vadd.f32 %v1172, %v1077
        %v1177 = vadd.f32 %v1173, %v1147
        %v1178 = vadd.f32 %v1174, %v1152
        %1179 = vst [vmem:[#allocation4] sm:$0xff] %v1175
        %1180 = vst [vmem:[#allocation4 + $0x8] sm:$0xff] %v1176
        %1181 = vst [vmem:[#allocation4 + $0x10] sm:$0xff] %v1177
        %1182 = vst [vmem:[#allocation4 + $0x18] sm:$0xff] %v1178
        // Predicated region
        $region49: #{tpu_custom_call.1} parent=31 // pred_check
          %p1183 = pneg %p314
        $region50: #{tpu_custom_call.1} parent=31 // pred_check_branch
          %1185 = sbr.rel (%p1183) target = $region52
        $region51: #{tpu_custom_call.1} parent=31 // pred_region
          %v1186 = vld [vmem:[#allocation3] sm:$0x1]
          %v1187 = vld [vmem:[#allocation3 + $0x1] sm:$0x1]
          %v1188 = vrcp.pop %v1186
          %v1189 = vrcp.pop %v1187
          %v1190 = vmul.f32 %v1186, %v1188
          %v1191 = vmul.f32 %v1187, %v1189
          %v1192 = vsub.f32 2.0, %v1190
          %v1193 = vsub.f32 2.0, %v1191
          %v1194 = vmul.f32 %v1188, %v1192
          %v1195 = vmul.f32 %v1189, %v1193
          %v1196 = vld [vmem:[#allocation4] sm:$0xff]
          %v1197 = vld [vmem:[#allocation4 + $0x8] sm:$0xff]
          %v1198 = vld [vmem:[#allocation4 + $0x10] sm:$0xff]
          %v1199 = vld [vmem:[#allocation4 + $0x18] sm:$0xff]
          %v1202 = vlaneseq
          %v1203 = vshrl.u32 %v1202, 7
          %v1204 = vsub.s32 0, %v1203
          %v1205 = vrot.slane %v1194, %v1204
          %v1206 = vlaneseq
          %v1207 = vshrl.u32 %v1206, 7
          %v1208 = vsub.s32 0, %v1207
          %v1209 = vrot.slane %v1195, %v1208
          %v1212 = vmul.f32 %v1196, %v1205
          %v1213 = vmul.f32 %v1197, %v1205
          %v1214 = vmul.f32 %v1198, %v1209
          %v1215 = vmul.f32 %v1199, %v1209
          %1216 = vst [vmem:[%s309] sm:$0xff] %v1212
          %1217 = vst [vmem:[%s309 + $0x8] sm:$0xff] %v1213
          %1218 = vst [vmem:[%s309 + $0x10] sm:$0xff] %v1214
          %1219 = vst [vmem:[%s309 + $0x18] sm:$0xff] %v1215
        $region52: #{tpu_custom_call.1} parent=31 // pred_fallthru
          _
        %s1220 = sand.u32 %s140, 1
        %s1221 = scalar_lea.sflag [#allocation7], %s1220
        %s1222 = sand.u32 %s140, 1
        %s1223 = smul.addr %s1222, 32
        %s1224 = scalar_lea.vmem [#allocation11], %s1223
        // Predicated region
        $region53: #{tpu_custom_call.1} parent=31 // pred_check
          %p1225 = pneg %p150
        $region54: #{tpu_custom_call.1} parent=31 // pred_check_branch
          %1227 = sbr.rel (%p1225) target = $region56
        $region55: #{tpu_custom_call.1} parent=31 // pred_region
          %s1228 = smul.u32 2, %s29
          %s1230 = ssub.s32 512, 512
          %1231 = vsyncadd %s1221, %s1230
          %s1232 = smul.addr %s1228, 2
          %s1233 = smul.addr %s28, 8
          %s1234 = sadd.s32 %s1232, %s1233
          %s1235 = smul.addr %s1234, 128
          %s1236 = scalar_lea.hbm %s3, %s1235
          %s1237 = sshll.u32 %s1224, 4
          %s1238 = int_to_ptr.vmem [resolvable:$true] %s1237
          %1243 = dma.vmem_to_hbm [thread:$0]  %s1238, 512, %s1236, %s1221, 128, 128, 8
        $region56: #{tpu_custom_call.1} parent=31 // pred_fallthru
          _
      $region32: #{tpu_custom_call.1} parent=5 // pred_fallthru
        _
      %p1244 = scmp.le.s32.totalorder 2, %s18
      // Predicated region
      $region57: #{tpu_custom_call.1} parent=5 // pred_check
        %p1245 = pneg %p1244
      $region58: #{tpu_custom_call.1} parent=5 // pred_check_branch
        %1247 = sbr.rel (%p1245) target = $region60
      $region59: #{tpu_custom_call.1} parent=5 // pred_region
        %s1248 = ssub.s32 %s18, 2
        // Predicated region
        $region61: #{tpu_custom_call.1} parent=59 // pred_check
          %p1249 = pneg %p156
        $region62: #{tpu_custom_call.1} parent=59 // pred_check_branch
          %1251 = sbr.rel (%p1249) target = $region64
        $region63: #{tpu_custom_call.1} parent=59 // pred_region
          %s1252 = sand.u32 %s141, 1
          %s1253 = scalar_lea.sflag [#allocation7], %s1252
          %s1254 = sand.u32 %s141, 1
          %s1255 = smul.addr %s1254, 32
          %s1256 = scalar_lea.vmem [#allocation11], %s1255
          %1257 = dma.done %s1253, 512
        $region64: #{tpu_custom_call.1} parent=59 // pred_fallthru
          _
      $region60: #{tpu_custom_call.1} parent=5 // pred_fallthru
        _
    $region6: #{tpu_custom_call.1} parent=1 // loop_footer
      %s22 = sadd.s32 1, %s18
    $region7: #{tpu_custom_call.1} parent=1 // loop_footer_branch
      %17 = sbr.rel target = $region3
    $region8: #{tpu_custom_call.1} parent=1 // loop_exit
      _
    %1258 = vsyncpa [#allocation6], 1
    %s1259 = scalar_lea.sflag [#allocation6], 1
    %1260 = vsyncpa %s1259, 1
    %1261 = vsyncpa [#allocation9], 1
    %s1262 = scalar_lea.sflag [#allocation9], 1
    %1263 = vsyncpa %s1262, 1
    %1264 = vsyncpa [#allocation7], 1
    %s1265 = scalar_lea.sflag [#allocation7], 1
    %1266 = vsyncpa %s1265, 1

</llo_original>
